<compile_context>
chip_gen: v7x
topology: tpu7x:2x2x1
jax: 0.10.0
libtpu: 0.0.40
codegen_flags: <defaults>
</compile_context>

<pallas_src>
import jax
import jax.numpy as jnp
import numpy as np
from jax.experimental import pallas as pl
from jax.experimental.pallas import tpu as pltpu

LANES = 128
SUBLANES = 8
TILE_ELEMS = SUBLANES * LANES          # 1024-element (8,128) vreg tile
TARGET_BLOCK_BYTES = 8 * 1024 * 1024   # ~8 MiB per block: safe on v5e/v6e/v7x
VMEM_LIMIT_BYTES = 48 * 1024 * 1024    # 4 x 8 MiB double-buffered in/out + headroom


# ======================================================================================
# Pallas kernel
# ======================================================================================
def identity_kernel(x_ref, o_ref):
    # One full-width VMEM load + store of the resident tile.
    o_ref[...] = x_ref[...]


# ======================================================================================
# Wrapper
# ======================================================================================
def identity(x):
    """Pallas-backed Identity: returns an array equal to x (same shape / dtype)."""
    orig_shape = x.shape
    orig_dtype = x.dtype
    n = x.size
    itemsize = jnp.dtype(orig_dtype).itemsize

    # ---- Layout plumbing (wrapper-side, zero extra kernel compute) -------------------
    # Flatten and pad to a multiple of 8*128 so the kernel sees a fully lane/sublane-dense
    # (rows, 128) slab with unmasked vld/vst.
    flat = x.reshape(-1)
    padded_n = ((n + TILE_ELEMS - 1) // TILE_ELEMS) * TILE_ELEMS
    if padded_n != n:
        flat = jnp.pad(flat, (0, padded_n - n))
    rows = padded_n // LANES  # always a multiple of 8

    # ---- Tile-size selection: biggest block up to ~8 MiB, rows padded to a multiple ---
    bytes_per_row = LANES * itemsize
    max_block_rows = max(SUBLANES, (TARGET_BLOCK_BYTES // bytes_per_row) // SUBLANES * SUBLANES)

    if rows <= max_block_rows:
        block_rows = rows
        grid_rows = 1
    else:
        block_rows = max_block_rows
        grid_rows = pl.cdiv(rows, block_rows)
        padded_rows = grid_rows * block_rows
        if padded_rows != rows:
            flat = jnp.pad(flat, (0, (padded_rows - rows) * LANES))
            rows = padded_rows

    x2 = flat.reshape(rows, LANES)

    out = pl.pallas_call(
        identity_kernel,
        out_shape=jax.ShapeDtypeStruct((rows, LANES), orig_dtype),
        grid=(grid_rows,),
        in_specs=[pl.BlockSpec((block_rows, LANES), lambda i: (i, 0))],
        out_specs=pl.BlockSpec((block_rows, LANES), lambda i: (i, 0)),
        input_output_aliases={0: 0},
        compiler_params=pltpu.CompilerParams(
            dimension_semantics=("parallel",),
            vmem_limit_bytes=VMEM_LIMIT_BYTES,
        ),
    )(x2)

    return out.reshape(-1)[:n].reshape(orig_shape)


# ======================================================================================
if __name__ == "__main__":
    key = jax.random.PRNGKey(0)
    k1, k2 = jax.random.split(key)

    # Shapes consistent with the text-embedding context: (batch=2, seq=8, hidden=32).
    x = jax.random.normal(k1, (2, 8, 32), jnp.float32)
    out = jax.jit(identity)(x)
    jax.block_until_ready(out)

    assert out.shape == x.shape and out.dtype == x.dtype
    np.testing.assert_array_equal(np.asarray(out), np.asarray(x))

    # Also exercise the non-128-divisible (padded) path with an odd total size.
    y = jax.random.normal(k2, (3, 5, 7), jnp.float32)
    out_y = jax.jit(identity)(y)
    jax.block_until_ready(out_y)
    assert out_y.shape == y.shape and out_y.dtype == y.dtype
    np.testing.assert_array_equal(np.asarray(out_y), np.asarray(y))

    print("KERNEL_OK")
</pallas_src>

<mosaic_0001>
module attributes {stable_mosaic.version = 11 : i64} {
  func.func @identity_kernel(%arg0: i32, %arg1: memref<8x128xf32, #tpu.memory_space<vmem>>, %arg2: memref<8x128xf32, #tpu.memory_space<vmem>>) attributes {dimension_semantics = [#tpu.dimension_semantics<parallel>], iteration_bounds = array<i64: 1>, scalar_prefetch = 0 : i64, scratch_operands = 0 : i64, tpu.core_type = #tpu.core_type<tc>, window_params = [{transform_indices = @transform_0, window_bounds = array<i64: 8, 128>}, {transform_indices = @transform_1, window_bounds = array<i64: 8, 128>}]} {
    %c0 = arith.constant 0 : index
    %c0_0 = arith.constant 0 : index
    %0 = vector.load %arg1[%c0, %c0_0] : memref<8x128xf32, #tpu.memory_space<vmem>>, vector<8x128xf32>
    %c0_1 = arith.constant 0 : index
    %c0_2 = arith.constant 0 : index
    %1 = vector.load %arg2[%c0_1, %c0_2] : memref<8x128xf32, #tpu.memory_space<vmem>>, vector<8x128xf32>
    tpu.vector_store %arg2[%c0_1, %c0_2], %0 {strides = array<i32>} : memref<8x128xf32, #tpu.memory_space<vmem>>, vector<8x128xf32>,
    return
  }
  func.func @transform_0(%arg0: i32) -> (i32, i32) {
    %c0_i32 = arith.constant 0 : i32
    %c0_i32_0 = arith.constant 0 : i32
    return %arg0, %c0_i32 : i32, i32
  }
  func.func @transform_1(%arg0: i32) -> (i32, i32) {
    %c0_i32 = arith.constant 0 : i32
    %c0_i32_0 = arith.constant 0 : i32
    return %arg0, %c0_i32 : i32, i32
  }
}

</mosaic_0001>

<llo_original>
// kernel: identity.1
$region0: #{identity.1}
  #allocation0 [shape = 'u32[]', space=smem, size = 0x4, offset = 0x4, fixed_abs, tag = 'smem constant byte address 0x4 - core index']
  #allocation1 [shape = 'u32[144,128]{1,0:T(1,128)}', space=vmem, size = 0x12000, scoped, tag = 'internal scratch']
  %s0 = inlined_call_operand.vmem [shape: f32[8,128], index: 0, kind: input, shape index: {}, may-alias: {0,1}]
  %s1 = inlined_call_operand.vmem [shape: f32[8,128], index: 1, kind: output, shape index: {}, may-alias: {0,1}]
  %s2 = sld [smem:[#allocation0]]
  $region14: #{identity.1} parent=0
    _
  %s4 = ssub.s32 1, %s2
  %s5 = scalar_select 0, %s4, %s2
  // Predicated region
  $region2: #{identity.1} parent=0 // pred_check
    _
  $region3: #{identity.1} parent=0 // pred_check_branch
    %7 = sbr.rel (0) target = $region5
  $region4: #{identity.1} parent=0 // pred_region
    _
  $region5: #{identity.1} parent=0 // pred_fallthru
    _
  %v8 = vld [vmem:[%s0] sm:$0xff]
  %9 = vst [vmem:[%s1] sm:$0xff] %v8
  // Predicated region
  $region6: #{identity.1} parent=0 // pred_check
    _
  $region7: #{identity.1} parent=0 // pred_check_branch
    %11 = sbr.rel (0) target = $region9
  $region8: #{identity.1} parent=0 // pred_region
    _
  $region9: #{identity.1} parent=0 // pred_fallthru
    _
  // Predicated region
  $region10: #{identity.1} parent=0 // pred_check
    _
  $region11: #{identity.1} parent=0 // pred_check_branch
    %13 = sbr.rel (0) target = $region13
  $region12: #{identity.1} parent=0 // pred_region
    _
  $region13: #{identity.1} parent=0 // pred_fallthru
    _

</llo_original>
